<compile_context>
chip_gen: v7x
topology: tpu7x:2x2x1
jax: 0.10.0
libtpu: 0.0.40
codegen_flags: <defaults>
</compile_context>

<pallas_src>
import math
import functools

import jax
import jax.numpy as jnp
from jax.experimental import pallas as pl
from jax.experimental.pallas import tpu as pltpu


# Abramowitz & Stegun style minimax approximation of arccos on [0, 1]
# (|error| <= 2e-8), extended to [-1, 1] via acos(x) = pi - acos(-x).
# Used instead of jnp.arccos to guarantee Mosaic lowering
# (only sqrt / mul / add / select are required).
_ACOS_COEFFS = (
    -0.0012624911,
    0.0066700901,
    -0.0170881256,
    0.0308918810,
    -0.0501743046,
    0.0889789874,
    -0.2145988016,
    1.5707963050,
)


def _acos(x):
    ax = jnp.abs(x)
    p = jnp.full_like(ax, _ACOS_COEFFS[0])
    for c in _ACOS_COEFFS[1:]:
        p = p * ax + c
    r = jnp.sqrt(jnp.maximum(1.0 - ax, 0.0)) * p
    return jnp.where(x >= 0, r, jnp.float32(math.pi) - r)


def _round_up(v, m):
    return (v + m - 1) // m * m


def _vmem_capacity_bytes():
    """Physical per-core VMEM; conservative 64 MiB (v7x) if the query fails."""
    try:
        info = pltpu.get_tpu_info()
        cap = getattr(info, "vmem_capacity_bytes", None)
        if cap:
            return int(cap)
    except Exception:
        pass
    return 64 * 2**20


# ---------------------------------------------------------------------------
# Kernels.  Tile shapes: x (TB,Fp) / w_t (Fp,TC) / y (TB,1) / out (TB,TC)
# Grid = (C-tiles, B-tiles): the W tile is held across the inner B axis.
# ---------------------------------------------------------------------------


def _sphereface_infer_kernel(x_ref, w_ref, out_ref):
    logits = jnp.dot(x_ref[...], w_ref[...], preferred_element_type=jnp.float32)
    out_ref[...] = logits.astype(out_ref.dtype)


def _sphereface_train_kernel(x_ref, w_ref, y_ref, out_ref, *, s, m, tc):
    i = pl.program_id(0)                        # C-tile index (outer axis)

    # [TB,Fp] x [Fp,TC] on the MXU with f32 accumulation.  The column
    # normalization 1/||w_c|| is already folded into w_ref by the wrapper.
    logits = jnp.dot(x_ref[...], w_ref[...], preferred_element_type=jnp.float32)

    # One-hot of the label column *within this C tile* (iota offset by i*tc).
    col = jax.lax.broadcasted_iota(jnp.int32, logits.shape, 1) + i * tc
    is_target = col == y_ref[...]               # (TB,TC) bool, y_ref is (TB,1)

    # Gather the label logit per row (0.0 if the label is not in this C tile);
    # restrict the expensive clip/acos/cos margin math to this (TB,1) column.
    t_y = jnp.sum(jnp.where(is_target, logits, 0.0), axis=-1, keepdims=True)
    t_y = jnp.clip(t_y, -1.0 + 1e-07, 1.0 - 1e-07)
    target = jnp.cos(jnp.float32(m) * _acos(t_y))          # (TB,1) f32

    out = jnp.float32(s) * jnp.where(is_target, target, logits)
    out_ref[...] = out.astype(out_ref.dtype)


# ---------------------------------------------------------------------------
# Wrapper.
# ---------------------------------------------------------------------------


def sphereface_forward(x, W, y=None, s=30.0, m=1.35,
                       compute_dtype=jnp.bfloat16,
                       out_dtype=jnp.float32,
                       tb_max=512, tc_max=2048,
                       vmem_budget_bytes=None):
    """Pallas implementation of SphereFace.forward(x, y).

    x: [B, num_features], W: [num_classes, num_features], y: [B] int labels
    or None (inference -> plain normalized logits).
    """
    B, F = x.shape
    C, F2 = W.shape
    assert F == F2, "feature dims of x and W must match"

    x = x.astype(jnp.float32)
    W = W.astype(jnp.float32)

    # One-time prep in XLA (hoisted out of the kernel): fold the per-class
    # inverse L2 norm (F.normalize, eps=1e-12) into W and transpose to [F, C]
    # so classes land on the lane axis (lane-dense output stores).
    inv_norm = 1.0 / jnp.maximum(
        jnp.sqrt(jnp.sum(W * W, axis=1, keepdims=True)), 1e-12)
    w_t = (W * inv_norm).T                                   # (F, C) f32

    # Pad the contraction dim to a multiple of 256: full MXU passes on
    # v6e/v7x (2x256x256) and a multiple of 128 for v5e. Zero padding is
    # numerically exact.
    Fp = _round_up(F, 256)
    if Fp != F:
        x = jnp.pad(x, ((0, 0), (0, Fp - F)))
        w_t = jnp.pad(w_t, ((0, Fp - F), (0, 0)))
    x_c = x.astype(compute_dtype)
    w_t = w_t.astype(compute_dtype)

    # ---- generation-aware VMEM budget / limit ----
    cap = _vmem_capacity_bytes()
    vmem_limit = int(cap // 2)                 # ~32 MiB on v7x, ~64 MiB v5e/v6e
    if vmem_budget_bytes is None:
        vmem_budget_bytes = max(16 * 2**20, vmem_limit - (8 << 20))

    in_dsz = jnp.dtype(compute_dtype).itemsize
    out_dsz = jnp.dtype(out_dtype).itemsize

    # ---- tile sizes: minimal padding first, then clamp against VMEM budget --
    B8 = _round_up(B, 8)
    C128 = _round_up(C, 128)
    TB = _round_up(-(-B8 // max(1, -(-B8 // tb_max))), 8)
    TC = _round_up(-(-C128 // max(1, -(-C128 // tc_max))), 128)

    def tile_bytes(tb, tc):
        streams = (2 * tb * Fp * in_dsz        # x tiles (streamed, double-buffered)
                   + 2 * Fp * tc * in_dsz      # W tiles (held across inner axis)
                   + 2 * tb * tc * out_dsz     # output tiles
                   + 2 * tb * 4)               # labels
        temps = 3 * tb * tc * 4                # f32 logits + iota/mask temporaries
        return streams + temps

    while tile_bytes(TB, TC) > vmem_budget_bytes and TC > 128:
        TC = max(128, (TC // 2) // 128 * 128)
    while tile_bytes(TB, TC) > vmem_budget_bytes and TB > 8:
        TB = max(8, (TB // 2) // 8 * 8)
    # TODO(synk): for very large F (>= ~2K) on v7x, add a K grid axis with an
    # f32 VMEM accumulator instead of shrinking TB/TC.

    Bp = _round_up(B, TB)
    Cp = _round_up(C, TC)
    if Bp != B:
        x_c = jnp.pad(x_c, ((0, Bp - B), (0, 0)))
    if Cp != C:
        w_t = jnp.pad(w_t, ((0, 0), (0, Cp - C)))

    # Outer axis over C tiles, inner axis over B tiles -> W tile reused across
    # the whole batch; each W tile is read from HBM exactly once.
    grid = (Cp // TC, Bp // TB)
    cp = pltpu.CompilerParams(
        dimension_semantics=("parallel", "parallel"),
        vmem_limit_bytes=vmem_limit,
    )

    x_spec = pl.BlockSpec((TB, Fp), lambda i, j: (j, 0))   # streams on inner axis
    w_spec = pl.BlockSpec((Fp, TC), lambda i, j: (0, i))   # held across inner axis
    o_spec = pl.BlockSpec((TB, TC), lambda i, j: (j, i))
    out_shape = jax.ShapeDtypeStruct((Bp, Cp), out_dtype)

    if y is None:
        out = pl.pallas_call(
            _sphereface_infer_kernel,
            out_shape=out_shape,
            grid_spec=pltpu.PrefetchScalarGridSpec(
                num_scalar_prefetch=0, grid=grid,
                in_specs=[x_spec, w_spec],
                out_specs=o_spec),
            compiler_params=cp,
        )(x_c, w_t)
    else:
        y2 = y.astype(jnp.int32).reshape(B, 1)
        if Bp != B:
            # padded rows get label -1 -> never match any column
            y2 = jnp.pad(y2, ((0, Bp - B), (0, 0)), constant_values=-1)
        y_spec = pl.BlockSpec((TB, 1), lambda i, j: (j, 0))
        out = pl.pallas_call(
            functools.partial(_sphereface_train_kernel,
                              s=float(s), m=float(m), tc=TC),
            out_shape=out_shape,
            grid_spec=pltpu.PrefetchScalarGridSpec(
                num_scalar_prefetch=0, grid=grid,
                in_specs=[x_spec, w_spec, y_spec],
                out_specs=o_spec),
            compiler_params=cp,
        )(x_c, w_t, y2)

    if Bp != B or Cp != C:
        out = out[:B, :C]
    return out


# ---------------------------------------------------------------------------
# Pure-JAX references (mirror the PyTorch module) and self-test.
# ---------------------------------------------------------------------------


def _reference(x, W, y=None, s=30.0, m=1.35):
    Wn = W / jnp.maximum(jnp.linalg.norm(W, axis=1, keepdims=True), 1e-12)
    logits = jnp.dot(x, Wn.T, precision=jax.lax.Precision.HIGHEST)
    if y is None:
        return logits
    t = jnp.clip(logits, -1.0 + 1e-07, 1.0 - 1e-07)
    target = jnp.cos(m * jnp.arccos(t))
    oh = jax.nn.one_hot(y, W.shape[0], dtype=jnp.float32)
    return s * (logits * (1.0 - oh) + target * oh)


def _reference_bf16_path(x, W, y, s=30.0, m=1.35):
    # Matches the kernel's default precision path: norm folded into W in f32,
    # bf16 operands, f32 accumulation, margin math in f32.
    inv_norm = 1.0 / jnp.maximum(
        jnp.sqrt(jnp.sum(W * W, axis=1, keepdims=True)), 1e-12)
    Wn = (W * inv_norm).astype(jnp.bfloat16)
    logits = jnp.dot(x.astype(jnp.bfloat16), Wn.T,
                     preferred_element_type=jnp.float32)
    t = jnp.clip(logits, -1.0 + 1e-07, 1.0 - 1e-07)
    target = jnp.cos(m * jnp.arccos(t))
    oh = jax.nn.one_hot(y, W.shape[0], dtype=jnp.float32)
    return s * (logits * (1.0 - oh) + target * oh)


if __name__ == "__main__":
    key = jax.random.PRNGKey(0)
    B, NUM_FEATURES, NUM_CLASSES = 8, 32, 128
    kx, kw, ky = jax.random.split(key, 3)

    x = jax.random.normal(kx, (B, NUM_FEATURES), dtype=jnp.float32)
    # Deterministic "xavier_uniform_" style init for W (num_classes, num_features).
    bound = math.sqrt(6.0 / (NUM_CLASSES + NUM_FEATURES))
    W = jax.random.uniform(kw, (NUM_CLASSES, NUM_FEATURES), dtype=jnp.float32,
                           minval=-bound, maxval=bound)
    y = jax.random.randint(ky, (B,), 0, NUM_CLASSES)

    ref_train = _reference(x, W, y)
    ref_infer = _reference(x, W, None)

    # 1) f32 MXU path: tight check vs reference (training + inference).
    out32 = jax.block_until_ready(
        sphereface_forward(x, W, y, compute_dtype=jnp.float32))
    assert out32.shape == (B, NUM_CLASSES)
    assert jnp.allclose(out32, ref_train, rtol=1e-2, atol=2e-2), "f32 train mismatch"

    logits32 = jax.block_until_ready(
        sphereface_forward(x, W, None, compute_dtype=jnp.float32))
    assert jnp.allclose(logits32, ref_infer, rtol=1e-2, atol=1e-2), "f32 infer mismatch"

    # 2) bf16 MXU path (production default), checked INCLUDING the label
    #    (margin) column against a precision-matched bf16 reference, plus the
    #    linear part against the exact reference with bf16-scaled tolerance.
    out_bf = jax.block_until_ready(sphereface_forward(x, W, y))
    ref_bf = _reference_bf16_path(x, W, y)
    assert out_bf.shape == (B, NUM_CLASSES)
    assert bool(jnp.all(jnp.isfinite(out_bf)))
    assert jnp.allclose(out_bf, ref_bf, rtol=5e-2, atol=0.5), \
        "bf16 train (full, incl. label column) mismatch"
    oh_mask = jnp.arange(NUM_CLASSES)[None, :] == y[:, None]
    assert jnp.allclose(jnp.where(oh_mask, 0.0, out_bf),
                        jnp.where(oh_mask, 0.0, ref_train),
                        rtol=2e-2, atol=1.0), "bf16 train (linear part) mismatch"

    logits_bf = jax.block_until_ready(sphereface_forward(x, W, None))
    assert jnp.allclose(logits_bf, ref_infer, rtol=2e-2, atol=5e-2), \
        "bf16 infer mismatch"

    # Optional bf16 output path (halves writeback) — just check it runs/shapes.
    out_bf16o = jax.block_until_ready(
        sphereface_forward(x, W, y, out_dtype=jnp.bfloat16))
    assert out_bf16o.dtype == jnp.bfloat16 and out_bf16o.shape == (B, NUM_CLASSES)
    assert bool(jnp.all(jnp.isfinite(out_bf16o.astype(jnp.float32))))

    # 3) Multi-tile grid + padding path (f32): forces a (2, 2) grid with
    #    non-divisible B / C, exercising W reuse across the inner B axis,
    #    the per-tile one-hot column offset, and the pad/slice logic.
    B2, C2 = 10, 200
    kx2, kw2, ky2 = jax.random.split(jax.random.PRNGKey(1), 3)
    x2 = jax.random.normal(kx2, (B2, NUM_FEATURES), dtype=jnp.float32)
    W2 = jax.random.uniform(kw2, (C2, NUM_FEATURES), dtype=jnp.float32,
                            minval=-bound, maxval=bound)
    y2 = jax.random.randint(ky2, (B2,), 0, C2)
    out2 = jax.block_until_ready(
        sphereface_forward(x2, W2, y2, compute_dtype=jnp.float32,
                           tb_max=8, tc_max=128))
    assert out2.shape == (B2, C2)
    assert jnp.allclose(out2, _reference(x2, W2, y2), rtol=1e-2, atol=2e-2), \
        "tiled/padded path mismatch"

    print("KERNEL_OK")
</pallas_src>

<mosaic_0001>
module attributes {stable_mosaic.version = 11 : i64} {
  func.func @_sphereface_train_kernel(%arg0: i32, %arg1: i32, %arg2: memref<8x256xf32, #tpu.memory_space<vmem>>, %arg3: memref<256x128xf32, #tpu.memory_space<vmem>>, %arg4: memref<8x1xi32, #tpu.memory_space<vmem>>, %arg5: memref<8x128xf32, #tpu.memory_space<vmem>>) attributes {dimension_semantics = [#tpu.dimension_semantics<parallel>, #tpu.dimension_semantics<parallel>], iteration_bounds = array<i64: 1, 1>, scalar_prefetch = 0 : i64, scratch_operands = 0 : i64, tpu.core_type = #tpu.core_type<tc>, window_params = [{transform_indices = @transform_0, window_bounds = array<i64: 8, 256>}, {transform_indices = @transform_1, window_bounds = array<i64: 256, 128>}, {transform_indices = @transform_2, window_bounds = array<i64: 8, 1>}, {transform_indices = @transform_3, window_bounds = array<i64: 8, 128>}]} {
    %c0 = arith.constant 0 : index
    %c0_0 = arith.constant 0 : index
    %0 = vector.load %arg2[%c0, %c0_0] : memref<8x256xf32, #tpu.memory_space<vmem>>, vector<8x256xf32>
    %c0_1 = arith.constant 0 : index
    %c0_2 = arith.constant 0 : index
    %1 = vector.load %arg3[%c0_1, %c0_2] : memref<256x128xf32, #tpu.memory_space<vmem>>, vector<256x128xf32>
    %cst = arith.constant dense<0.000000e+00> : vector<8x128xf32>
    %2 = tpu.matmul %0, %1, %cst {dimension_numbers = #tpu.dot_dimension_numbers<[1], [0], [0], [1], [0, 0, 1, 1], [], []>} : vector<8x256xf32>, vector<256x128xf32>, vector<8x128xf32> -> vector<8x128xf32>
    %3 = tpu.iota {dimensions = array<i32: 1>} : vector<8x128xi32>
    %c128_i32 = arith.constant 128 : i32
    %4 = arith.muli %arg0, %c128_i32 : i32
    %5 = vector.broadcast %4 : i32 to vector<8x128xi32>
    %6 = arith.addi %3, %5 : vector<8x128xi32>
    %c0_3 = arith.constant 0 : index
    %c0_4 = arith.constant 0 : index
    %7 = vector.load %arg4[%c0_3, %c0_4] : memref<8x1xi32, #tpu.memory_space<vmem>>, vector<8x1xi32>
    %8 = vector.broadcast %7 : vector<8x1xi32> to vector<8x128xi32>
    %9 = arith.cmpi eq, %6, %8 : vector<8x128xi32>
    %cst_5 = arith.constant 0.000000e+00 : f32
    %10 = vector.broadcast %cst_5 : f32 to vector<8x128xf32>
    %11 = arith.select %9, %2, %10 : vector<8x128xi1>, vector<8x128xf32>
    %cst_6 = arith.constant dense<0.000000e+00> : vector<8xf32>
    %12 = vector.multi_reduction <add>, %11, %cst_6 [1] : vector<8x128xf32> to vector<8xf32>
    %13 = vector.shape_cast %12 : vector<8xf32> to vector<8x1xf32>
    %cst_7 = arith.constant -0.99999988 : f32
    %cst_8 = arith.constant 0.99999988 : f32
    %14 = vector.broadcast %cst_7 : f32 to vector<8x1xf32>
    %15 = arith.maximumf %14, %13 : vector<8x1xf32>
    %16 = vector.broadcast %cst_8 : f32 to vector<8x1xf32>
    %17 = arith.minimumf %16, %15 : vector<8x1xf32>
    %18 = math.absf %17 : vector<8x1xf32>
    %cst_9 = arith.constant -0.0012624911 : f32
    %19 = vector.broadcast %cst_9 : f32 to vector<8x1xf32>
    %20 = arith.mulf %19, %18 : vector<8x1xf32>
    %cst_10 = arith.constant 6.670090e-03 : f32
    %21 = vector.broadcast %cst_10 : f32 to vector<8x1xf32>
    %22 = arith.addf %20, %21 : vector<8x1xf32>
    %23 = arith.mulf %22, %18 : vector<8x1xf32>
    %cst_11 = arith.constant -0.0170881264 : f32
    %24 = vector.broadcast %cst_11 : f32 to vector<8x1xf32>
    %25 = arith.addf %23, %24 : vector<8x1xf32>
    %26 = arith.mulf %25, %18 : vector<8x1xf32>
    %cst_12 = arith.constant 0.0308918804 : f32
    %27 = vector.broadcast %cst_12 : f32 to vector<8x1xf32>
    %28 = arith.addf %26, %27 : vector<8x1xf32>
    %29 = arith.mulf %28, %18 : vector<8x1xf32>
    %cst_13 = arith.constant -0.0501743034 : f32
    %30 = vector.broadcast %cst_13 : f32 to vector<8x1xf32>
    %31 = arith.addf %29, %30 : vector<8x1xf32>
    %32 = arith.mulf %31, %18 : vector<8x1xf32>
    %cst_14 = arith.constant 0.0889789909 : f32
    %33 = vector.broadcast %cst_14 : f32 to vector<8x1xf32>
    %34 = arith.addf %32, %33 : vector<8x1xf32>
    %35 = arith.mulf %34, %18 : vector<8x1xf32>
    %cst_15 = arith.constant -0.214598805 : f32
    %36 = vector.broadcast %cst_15 : f32 to vector<8x1xf32>
    %37 = arith.addf %35, %36 : vector<8x1xf32>
    %38 = arith.mulf %37, %18 : vector<8x1xf32>
    %cst_16 = arith.constant 1.57079625 : f32
    %39 = vector.broadcast %cst_16 : f32 to vector<8x1xf32>
    %40 = arith.addf %38, %39 : vector<8x1xf32>
    %cst_17 = arith.constant 1.000000e+00 : f32
    %41 = vector.broadcast %cst_17 : f32 to vector<8x1xf32>
    %42 = arith.subf %41, %18 : vector<8x1xf32>
    %cst_18 = arith.constant 0.000000e+00 : f32
    %43 = vector.broadcast %cst_18 : f32 to vector<8x1xf32>
    %44 = arith.maximumf %42, %43 : vector<8x1xf32>
    %45 = math.sqrt %44 : vector<8x1xf32>
    %46 = arith.mulf %45, %40 : vector<8x1xf32>
    %cst_19 = arith.constant 0.000000e+00 : f32
    %47 = vector.broadcast %cst_19 : f32 to vector<8x1xf32>
    %48 = arith.cmpf oge, %17, %47 : vector<8x1xf32>
    %cst_20 = arith.constant 3.14159274 : f32
    %49 = vector.broadcast %cst_20 : f32 to vector<8x1xf32>
    %50 = arith.subf %49, %46 : vector<8x1xf32>
    %51 = arith.select %48, %46, %50 : vector<8x1xi1>, vector<8x1xf32>
    %cst_21 = arith.constant 1.350000e+00 : f32
    %52 = vector.broadcast %cst_21 : f32 to vector<8x1xf32>
    %53 = arith.mulf %52, %51 : vector<8x1xf32>
    %54 = math.cos %53 : vector<8x1xf32>
    %55 = vector.shape_cast %54 : vector<8x1xf32> to vector<8x1xf32>
    %56 = vector.broadcast %55 : vector<8x1xf32> to vector<8x128xf32>
    %57 = arith.select %9, %56, %2 : vector<8x128xi1>, vector<8x128xf32>
    %cst_22 = arith.constant 3.000000e+01 : f32
    %58 = vector.broadcast %cst_22 : f32 to vector<8x128xf32>
    %59 = arith.mulf %58, %57 : vector<8x128xf32>
    %c0_23 = arith.constant 0 : index
    %c0_24 = arith.constant 0 : index
    %60 = vector.load %arg5[%c0_23, %c0_24] : memref<8x128xf32, #tpu.memory_space<vmem>>, vector<8x128xf32>
    tpu.vector_store %arg5[%c0_23, %c0_24], %59 {strides = array<i32>} : memref<8x128xf32, #tpu.memory_space<vmem>>, vector<8x128xf32>,
    return
  }
  func.func @transform_0(%arg0: i32, %arg1: i32) -> (i32, i32) {
    %c0_i32 = arith.constant 0 : i32
    %c0_i32_0 = arith.constant 0 : i32
    return %arg1, %c0_i32 : i32, i32
  }
  func.func @transform_1(%arg0: i32, %arg1: i32) -> (i32, i32) {
    %c0_i32 = arith.constant 0 : i32
    %c0_i32_0 = arith.constant 0 : i32
    return %c0_i32, %arg0 : i32, i32
  }
  func.func @transform_2(%arg0: i32, %arg1: i32) -> (i32, i32) {
    %c0_i32 = arith.constant 0 : i32
    %c0_i32_0 = arith.constant 0 : i32
    return %arg1, %c0_i32 : i32, i32
  }
  func.func @transform_3(%arg0: i32, %arg1: i32) -> (i32, i32) {
    %c0_i32 = arith.constant 0 : i32
    return %arg1, %arg0 : i32, i32
  }
}

</mosaic_0001>

<llo_original>
// kernel: tpu_custom_call.1
$region0: #{tpu_custom_call.1}
  #allocation0 [shape = 'u32[]', space=smem, size = 0x4, offset = 0x4, fixed_abs, tag = 'smem constant byte address 0x4 - core index']
  #allocation1 [shape = 'u32[144,128]{1,0:T(1,128)}', space=vmem, size = 0x12000, scoped, tag = 'internal scratch']
  %s0 = inlined_call_operand.hbm [shape: f32[8,256], index: 0, kind: input, shape index: {}]
  %s1 = inlined_call_operand.hbm [shape: f32[256,128], index: 1, kind: input, shape index: {}]
  %s2 = inlined_call_operand.vmem [shape: s32[8,1], index: 2, kind: input, shape index: {}]
  %s3 = inlined_call_operand.hbm [shape: f32[8,128], index: 3, kind: output, shape index: {}]
  %s4 = sld [smem:[#allocation0]]
  $region30: #{tpu_custom_call.1} parent=0
    _
  %s6 = ssub.s32 1, %s4
  %s7 = scalar_select 0, %s6, %s4
  $region1: #{tpu_custom_call.1} parent=0
    #allocation2 [shape = 'u8[8192]{0}', space=vmem, size = 0x2000, scoped, tag = 'input window, operand 0, single buffered']
    #allocation3 [shape = 's32[1]{0}', space=sflag, size = 0x4, scoped, tag = 'scoped memory for tpu_custom_call.1']
    #allocation4 [shape = 's32[1]{0}', space=sflag, size = 0x4, scoped, tag = 'scoped memory for tpu_custom_call.1']
    #allocation5 [shape = 'u8[131072]{0}', space=vmem, size = 0x20000, scoped, tag = 'input window, operand 1, single buffered']
    #allocation6 [shape = 's32[1]{0}', space=sflag, size = 0x4, scoped, tag = 'scoped memory for tpu_custom_call.1']
    #allocation7 [shape = 'u8[4096]{0}', space=vmem, size = 0x1000, scoped, tag = 'output window, operand 0, single buffered']
    %8 = vsyncpa [#allocation3], 0
    %9 = vsyncpa [#allocation6], 0
    %10 = vsyncpa [#allocation4], 0
    // Predicated region
    $region2: #{tpu_custom_call.1} parent=1 // pred_check
      _
    $region3: #{tpu_custom_call.1} parent=1 // pred_check_branch
      %12 = sbr.rel (0) target = $region5
    $region4: #{tpu_custom_call.1} parent=1 // pred_region
      %s14 = ssub.s32 256, 256
      %15 = vsyncadd [#allocation3], %s14
      %s17 = sshll.u32 [#allocation2], 4
      %s18 = int_to_ptr.vmem [resolvable:$true] %s17
      %20 = dma.hbm_to_vmem [thread:$0]  %s0, 256, %s18, [#allocation3]
    $region5: #{tpu_custom_call.1} parent=1 // pred_fallthru
      _
    // Predicated region
    $region6: #{tpu_custom_call.1} parent=1 // pred_check
      _
    $region7: #{tpu_custom_call.1} parent=1 // pred_check_branch
      %22 = sbr.rel (0) target = $region9
    $region8: #{tpu_custom_call.1} parent=1 // pred_region
      %s24 = ssub.s32 4096, 4096
      %25 = vsyncadd [#allocation6], %s24
      %s26 = sshll.u32 [#allocation5], 4
      %s27 = int_to_ptr.vmem [resolvable:$true] %s26
      %32 = dma.hbm_to_vmem [thread:$0]  %s1, 4096, %s27, [#allocation6], 128, 128, 8
    $region9: #{tpu_custom_call.1} parent=1 // pred_fallthru
      _
    // Predicated region
    $region10: #{tpu_custom_call.1} parent=1 // pred_check
      _
    $region11: #{tpu_custom_call.1} parent=1 // pred_check_branch
      %34 = sbr.rel (0) target = $region13
    $region12: #{tpu_custom_call.1} parent=1 // pred_region
      _
    $region13: #{tpu_custom_call.1} parent=1 // pred_fallthru
      _
    // Predicated region
    $region14: #{tpu_custom_call.1} parent=1 // pred_check
      _
    $region15: #{tpu_custom_call.1} parent=1 // pred_check_branch
      %36 = sbr.rel (0) target = $region17
    $region16: #{tpu_custom_call.1} parent=1 // pred_region
      %37 = dma.done [#allocation3], 256
    $region17: #{tpu_custom_call.1} parent=1 // pred_fallthru
      _
    // Predicated region
    $region18: #{tpu_custom_call.1} parent=1 // pred_check
      _
    $region19: #{tpu_custom_call.1} parent=1 // pred_check_branch
      %39 = sbr.rel (0) target = $region21
    $region20: #{tpu_custom_call.1} parent=1 // pred_region
      %40 = dma.done [#allocation6], 4096
    $region21: #{tpu_custom_call.1} parent=1 // pred_fallthru
      _
    %v41 = vld [vmem:[#allocation2] sm:$0xff]
    %v42 = vld [vmem:[#allocation2 + $0x8] sm:$0xff]
    %v43 = vld [vmem:[#allocation5] sm:$0xff]
    %v44 = vld [vmem:[#allocation5 + $0x8] sm:$0xff]
    %v45 = vld [vmem:[#allocation5 + $0x10] sm:$0xff]
    %v46 = vld [vmem:[#allocation5 + $0x18] sm:$0xff]
    %v47 = vld [vmem:[#allocation5 + $0x20] sm:$0xff]
    %v48 = vld [vmem:[#allocation5 + $0x28] sm:$0xff]
    %v49 = vld [vmem:[#allocation5 + $0x30] sm:$0xff]
    %v50 = vld [vmem:[#allocation5 + $0x38] sm:$0xff]
    %v51 = vld [vmem:[#allocation5 + $0x40] sm:$0xff]
    %v52 = vld [vmem:[#allocation5 + $0x48] sm:$0xff]
    %v53 = vld [vmem:[#allocation5 + $0x50] sm:$0xff]
    %v54 = vld [vmem:[#allocation5 + $0x58] sm:$0xff]
    %v55 = vld [vmem:[#allocation5 + $0x60] sm:$0xff]
    %v56 = vld [vmem:[#allocation5 + $0x68] sm:$0xff]
    %v57 = vld [vmem:[#allocation5 + $0x70] sm:$0xff]
    %v58 = vld [vmem:[#allocation5 + $0x78] sm:$0xff]
    %v59 = vld [vmem:[#allocation5 + $0x80] sm:$0xff]
    %v60 = vld [vmem:[#allocation5 + $0x88] sm:$0xff]
    %v61 = vld [vmem:[#allocation5 + $0x90] sm:$0xff]
    %v62 = vld [vmem:[#allocation5 + $0x98] sm:$0xff]
    %v63 = vld [vmem:[#allocation5 + $0xa0] sm:$0xff]
    %v64 = vld [vmem:[#allocation5 + $0xa8] sm:$0xff]
    %v65 = vld [vmem:[#allocation5 + $0xb0] sm:$0xff]
    %v66 = vld [vmem:[#allocation5 + $0xb8] sm:$0xff]
    %v67 = vld [vmem:[#allocation5 + $0xc0] sm:$0xff]
    %v68 = vld [vmem:[#allocation5 + $0xc8] sm:$0xff]
    %v69 = vld [vmem:[#allocation5 + $0xd0] sm:$0xff]
    %v70 = vld [vmem:[#allocation5 + $0xd8] sm:$0xff]
    %v71 = vld [vmem:[#allocation5 + $0xe0] sm:$0xff]
    %v72 = vld [vmem:[#allocation5 + $0xe8] sm:$0xff]
    %v73 = vld [vmem:[#allocation5 + $0xf0] sm:$0xff]
    %v74 = vld [vmem:[#allocation5 + $0xf8] sm:$0xff]
    %75 = vmatprep.subr.mxu0 0.0
    %76 = vmatpush1.msra.mxu0 %v43
    %77 = vmatprep.subr.mxu0 0.0
    %78 = vmatpush1.msra.mxu0 %v44
    %79 = vmatprep.subr.mxu0 0.0
    %80 = vmatpush1.msra.mxu0 %v45
    %81 = vmatprep.subr.mxu0 0.0
    %82 = vmatpush1.msra.mxu0 %v46
    %83 = vmatprep.subr.mxu0 0.0
    %84 = vmatpush1.msra.mxu0 %v47
    %85 = vmatprep.subr.mxu0 0.0
    %86 = vmatpush1.msra.mxu0 %v48
    %87 = vmatprep.subr.mxu0 0.0
    %88 = vmatpush1.msra.mxu0 %v49
    %89 = vmatprep.subr.mxu0 0.0
    %90 = vmatpush1.msra.mxu0 %v50
    %91 = vmatprep.subr.mxu0 0.0
    %92 = vmatpush1.msra.mxu0 %v51
    %93 = vmatprep.subr.mxu0 0.0
    %94 = vmatpush1.msra.mxu0 %v52
    %95 = vmatprep.subr.mxu0 0.0
    %96 = vmatpush1.msra.mxu0 %v53
    %97 = vmatprep.subr.mxu0 0.0
    %98 = vmatpush1.msra.mxu0 %v54
    %99 = vmatprep.subr.mxu0 0.0
    %100 = vmatpush1.msra.mxu0 %v55
    %101 = vmatprep.subr.mxu0 0.0
    %102 = vmatpush1.msra.mxu0 %v56
    %103 = vmatprep.subr.mxu0 0.0
    %104 = vmatpush1.msra.mxu0 %v57
    %105 = vmatprep.subr.mxu0 0.0
    %106 = vmatpush1.msra.mxu0 %v58
    %107 = vmatprep.subr.mxu0 0.0
    %108 = vmatpush1.msra.mxu0 %v59
    %109 = vmatprep.subr.mxu0 0.0
    %110 = vmatpush1.msra.mxu0 %v60
    %111 = vmatprep.subr.mxu0 0.0
    %112 = vmatpush1.msra.mxu0 %v61
    %113 = vmatprep.subr.mxu0 0.0
    %114 = vmatpush1.msra.mxu0 %v62
    %115 = vmatprep.subr.mxu0 0.0
    %116 = vmatpush1.msra.mxu0 %v63
    %117 = vmatprep.subr.mxu0 0.0
    %118 = vmatpush1.msra.mxu0 %v64
    %119 = vmatprep.subr.mxu0 0.0
    %120 = vmatpush1.msra.mxu0 %v65
    %121 = vmatprep.subr.mxu0 0.0
    %122 = vmatpush1.msra.mxu0 %v66
    %123 = vmatprep.subr.mxu0 0.0
    %124 = vmatpush1.msra.mxu0 %v67
    %125 = vmatprep.subr.mxu0 0.0
    %126 = vmatpush1.msra.mxu0 %v68
    %127 = vmatprep.subr.mxu0 0.0
    %128 = vmatpush1.msra.mxu0 %v69
    %129 = vmatprep.subr.mxu0 0.0
    %130 = vmatpush1.msra.mxu0 %v70
    %131 = vmatprep.subr.mxu0 0.0
    %132 = vmatpush1.msra.mxu0 %v71
    %133 = vmatprep.subr.mxu0 0.0
    %134 = vmatpush1.msra.mxu0 %v72
    %135 = vmatprep.subr.mxu0 0.0
    %136 = vmatpush1.msra.mxu0 %v73
    %137 = vmatprep.subr.mxu0 0.0
    %138 = vmatpush1.msra.mxu0 %v74
    %139 = vmatprep.mubr.f32.mxu0 %v42
    %140 = vmatmul.mubr.f32.gmra.mrb[0].mxu0 %v41
    %v141 = vpop.f32.mrb[0].mxu0
    %v142 = vadd.f32 0.0, %v141
    %v143 = vpop.f32.mrb[0].mxu0
    %144 = vdwg.mxu0
    %v145 = vlaneseq
    %v146 = vand.u32 %v145, 127
    %s147 = smul.u32 0, 128
    %v148 = vstv %s147
    %v149 = vadd.s32 %v146, %v148
    %v150 = vld [vmem:[%s2] sm:$0xff]
    %151 = vset.pattern.permute.xlu0 0
    %152 = vperm.xlu0 %151, %v150
    %v153 = vpop.permute.xlu0 %152
    %vm154 = vcmp.eq.s32.totalorder %v149, %v153
    %v155 = vsel %vm154, %v142, 0.0
    %156 = vadd.xlane.f32.xlu0 %v155
    %v157 = vpop.xlane.xlu0 %156
    %v158 = vmax.f32 %v157, -0.9999999
    %v159 = vmin.f32 %v158, 0.9999999
    %v160 = vand.u32 2147483647, %v159
    %v161 = vmul.f32 %v160, -0.0012624911
    %v162 = vadd.f32 %v161, 0.00667009
    %v163 = vmul.f32 %v162, %v160
    %v164 = vadd.f32 %v163, -0.017088126
    %v165 = vmul.f32 %v164, %v160
    %v166 = vadd.f32 %v165, 0.03089188
    %v167 = vmul.f32 %v166, %v160
    %v168 = vadd.f32 %v167, -0.050174303
    %v169 = vmul.f32 %v168, %v160
    %v170 = vadd.f32 %v169, 0.08897899
    %v171 = vmul.f32 %v170, %v160
    %v172 = vadd.f32 %v171, -0.2145988
    %v173 = vmul.f32 %v172, %v160
    %v174 = vadd.f32 %v173, 1.5707963
    %v175 = vsub.f32 1.0, %v160
    %v176 = vmax.f32 %v175, 0.0
    %v177 = vrsqrt.pop %v176
    %v178 = vmul.f32 %v176, %v177
    %vm179 = vcmp.eq.f32.partialorder %v176, inf
    %v180 = vsel %vm179, %v176, %v178
    %vm181 = vcmp.eq.f32.partialorder %v176, 0.0
    %v182 = vand.u32 %v176, 2147483648
    %v183 = vsel %vm181, %v182, %v180
    %v184 = vmul.f32 %v183, %v174
    %vm185 = vcmp.ge.f32.partialorder %v159, 0.0
    %v186 = vsub.f32 3.1415927, %v184
    %v187 = vsel %vm185, %v184, %v186
    %v188 = vmul.f32 %v187, 1.35
    %v189 = vand.u32 2147483647, %v188
    %vm190 = vcmp.le.f32.partialorder %v189, 0.7853982
    %vm191 = vcmp.lt.s32.totalorder %v188, 0
    %v192 = vand.u32 %v188, 2139095040
    %v193 = vshrl.u32 %v192, 23
    %v194 = vsub.s32 %v193, 127
    %v195 = vand.u32 2147483647, %v188
    %v196 = vand.u32 %v195, 8388607
    %v197 = vor.u32 %v196, 8388608
    %v198 = vsub.s32 0, %v197
    %v199 = vadd.s32 %v194, 1
    %vm200 = vcmp.gt.s32.totalorder %v199, 0
    %v201 = vsel %vm200, %v199, 0
    %v202 = vshrl.u32 %v201, 5
    %v203 = vand.u32 %v201, 31
    %v204 = vsub.s32 32, %v203
    %v205 = vshrl.u32 683565275, %v204
    %v206 = vshll.u32 683565275, %v203
    %v207 = vshrl.u32 2475754826, %v204
    %v208 = vor.u32 %v206, %v207
    %v209 = vshll.u32 2475754826, %v203
    %v210 = vshrl.u32 2131351028, %v204
    %v211 = vor.u32 %v209, %v210
    %v212 = vshll.u32 2131351028, %v203
    %v213 = vshrl.u32 2102212464, %v204
    %v214 = vor.u32 %v212, %v213
    %v215 = vshll.u32 2102212464, %v203
    %v216 = vshrl.u32 920167782, %v204
    %v217 = vor.u32 %v215, %v216
    %v218 = vshll.u32 920167782, %v203
    %v219 = vshrl.u32 1326507024, %v204
    %v220 = vor.u32 %v218, %v219
    %vm221 = vcmp.lt.s32.totalorder %v202, 1
    %vm222 = vcmp.lt.s32.totalorder %v202, 2
    %vm223 = vcmp.lt.s32.totalorder %v202, 3
    %vm224 = vcmp.lt.s32.totalorder %v202, 4
    %v225 = vsel %vm221, %v205, %v208
    %v226 = vsel %vm224, %v214, 2102212464
    %v227 = vsel %vm223, %v211, %v226
    %v228 = vsel %vm222, %v225, %v227
    %v229 = vsel %vm221, %v208, %v211
    %v230 = vsel %vm224, %v217, 920167782
    %v231 = vsel %vm223, %v214, %v230
    %v232 = vsel %vm222, %v229, %v231
    %v233 = vsel %vm221, %v211, %v214
    %v234 = vsel %vm224, %v220, 1326507024
    %v235 = vsel %vm223, %v217, %v234
    %v236 = vsel %vm222, %v233, %v235
    %v237 = vshll.u32 %v197, 8
    %v238 = vmul.u32.u64.compose %v237, %v236
    %v239 = vextract.low.u32 %v238
    %v240 = vextract.high.u32 %v238
    %v241 = vmul.u32.u64.compose %v237, %v232
    %v242 = vextract.low.u32 %v241
    %v243 = vextract.high.u32 %v241
    %v244 = vmul.u32 %v237, %v228
    %v245 = vadd.s32 %v240, %v242
    %vm246 = vc.u32 %v240, %v242
    %v247 = vadd.s32 %v243, 1
    %v248 = vsel %vm246, %v247, %v243
    %v249 = vadd.s32 %v244, %v248
    %v250 = vadd.s32 %v249, 536870912
    %v251 = vshrl.u32 %v250, 30
    %v252 = vshll.u32 %v251, 30
    %v253 = vsub.s32 %v249, %v252
    %vm254 = vcmp.lt.s32.totalorder %v253, 0
    %v255 = vsub.s32 0, %v253
    %v256 = vsel %vm254, %v255, %v253
    %v257 = vclz %v256
    %v258 = vsub.s32 %v257, 2
    %vm259 = vcmp.gt.s32.totalorder 0, %v258
    %v260 = vsel %vm259, 0, %v258
    %v261 = vsub.s32 32, %v260
    %v262 = vshll.u32 %v253, %v260
    %v263 = vshrl.u32 %v245, %v261
    %v264 = vor.u32 %v262, %v263
    %v265 = vsub.s32 4294967266, %v260
    %v266 = vadd.s32 %v265, 127
    %v267 = vshll.u32 %v266, 23
    %v268 = vor.u32 4788187, %v267
    %v269 = vand.u32 2147483647, %v268
    %v271 = vcvt.s32.f32 %v264
    %v272 = vmul.f32 %v271, %v269
    %v273 = vxor.u32 %v272, 2147483648
    %v274 = vsel %vm191, %v273, %v272
    %v275 = vsub.s32 4, %v251
    %v276 = vsel %vm191, %v275, %v251
    %v277 = vsel %vm190, %v188, %v274
    %v278 = vsel %vm190, 0, %v276
    %v279 = vcosq.f32.pop %v277
    %v280 = vsinq.f32.pop %v277
    %vm281 = vweird.f32 %v188
    %v282 = vand.u32 %v278, 3
    %vm283 = vcmp.lt.s32.totalorder %v282, 2
    %vm284 = vcmp.eq.s32.totalorder %v282, 0
    %v285 = vxor.u32 %v280, 2147483648
    %v286 = vsel %vm284, %v279, %v285
    %vm287 = vcmp.eq.s32.totalorder %v282, 2
    %v288 = vxor.u32 %v279, 2147483648
    %v289 = vsel %vm287, %v288, %v280
    %v290 = vsel %vm283, %v286, %v289
    %v291 = vsel %vm281, nan, %v290
    %v292 = vsel %vm154, %v291, %v142
    %v293 = vmul.f32 %v292, 30.0
    %294 = vst [vmem:[#allocation7] sm:$0xff] %v293
    // Predicated region
    $region22: #{tpu_custom_call.1} parent=1 // pred_check
      _
    $region23: #{tpu_custom_call.1} parent=1 // pred_check_branch
      %296 = sbr.rel (0) target = $region25
    $region24: #{tpu_custom_call.1} parent=1 // pred_region
      %s298 = ssub.s32 128, 128
      %299 = vsyncadd [#allocation4], %s298
      %s301 = sshll.u32 [#allocation7], 4
      %s302 = int_to_ptr.vmem [resolvable:$true] %s301
      %304 = dma.vmem_to_hbm [thread:$0]  %s302, 128, %s3, [#allocation4]
    $region25: #{tpu_custom_call.1} parent=1 // pred_fallthru
      _
    // Predicated region
    $region26: #{tpu_custom_call.1} parent=1 // pred_check
      _
    $region27: #{tpu_custom_call.1} parent=1 // pred_check_branch
      %306 = sbr.rel (0) target = $region29
    $region28: #{tpu_custom_call.1} parent=1 // pred_region
      %307 = dma.done [#allocation4], 128
    $region29: #{tpu_custom_call.1} parent=1 // pred_fallthru
      _
    %308 = vsyncpa [#allocation3], 1
    %309 = vsyncpa [#allocation6], 1
    %310 = vsyncpa [#allocation4], 1

</llo_original>
